<compile_context>
chip_gen: v5e
topology: v5e:2x2
jax: 0.10.0
libtpu: 0.0.40
codegen_flags: <defaults>
</compile_context>

<pallas_src>
import jax
import jax.numpy as jnp
from jax.experimental import pallas as pl
from jax.experimental.pallas import tpu as pltpu


# ----------------------------------------------------------------------------
# whiteBalance kernel: out = raw / light  (light broadcast along lanes)
# ----------------------------------------------------------------------------
def _white_balance_kernel(raw_ref, light_ref, out_ref):
    # raw_ref:   (R, L)   R = prod(LightColour.shape), L = H*W
    # light_ref: (R, 1)   per-row light colour
    # out_ref:   (R, L)
    out_ref[...] = raw_ref[...] / light_ref[...]


def white_balance(raw, light):
    """raw: (..., H, W), light: raw.shape[:-2]; returns raw / light[..., None, None]."""
    assert raw.shape[:-2] == light.shape, (raw.shape, light.shape)
    H, W = raw.shape[-2], raw.shape[-1]
    raw2 = raw.reshape(-1, H * W)                       # (R, L) lane-dense
    light2 = light.reshape(-1, 1).astype(raw.dtype)     # (R, 1)
    R, L = raw2.shape
    out2 = pl.pallas_call(
        _white_balance_kernel,
        out_shape=jax.ShapeDtypeStruct((R, L), raw.dtype),
        grid=(1,),
        in_specs=[
            pl.BlockSpec((R, L), lambda i: (0, 0)),
            pl.BlockSpec((R, 1), lambda i: (0, 0)),
        ],
        out_specs=pl.BlockSpec((R, L), lambda i: (0, 0)),
        compiler_params=pltpu.CompilerParams(
            dimension_semantics=("parallel",)),
    )(raw2, light2)
    return out2.reshape(raw.shape)


# ----------------------------------------------------------------------------
# LightColour kernel (dependent module): l_t = e @ [ss_r, ss_g, ss_b]
# ----------------------------------------------------------------------------
def _light_colour_kernel(e_ref, ss_ref, out_ref):
    # e_ref: (B, S); ss_ref: (S, 3); out_ref: (B, 3)
    out_ref[...] = jnp.dot(
        e_ref[...], ss_ref[...],
        preferred_element_type=jnp.float32).astype(out_ref.dtype)


def light_colour(e, cam_ss):
    """e: (B, S); cam_ss: 3 vectors of shape (S,). Returns (B, 3)."""
    ss_r, ss_g, ss_b = cam_ss
    ss = jnp.stack([ss_r, ss_g, ss_b], axis=1).astype(jnp.float32)  # (S, 3)
    B, S = e.shape
    return pl.pallas_call(
        _light_colour_kernel,
        out_shape=jax.ShapeDtypeStruct((B, 3), jnp.float32),
        grid=(1,),
        in_specs=[
            pl.BlockSpec((B, S), lambda i: (0, 0)),
            pl.BlockSpec((S, 3), lambda i: (0, 0)),
        ],
        out_specs=pl.BlockSpec((B, 3), lambda i: (0, 0)),
        compiler_params=pltpu.CompilerParams(
            dimension_semantics=("parallel",)),
    )(e.astype(jnp.float32), ss)


# ----------------------------------------------------------------------------
# Pure-JAX references (mirror the PyTorch modules exactly).
# ----------------------------------------------------------------------------
def light_colour_ref(e, cam_ss):
    ss_r, ss_g, ss_b = cam_ss
    l_r = jnp.sum(e * ss_r, axis=1)
    l_g = jnp.sum(e * ss_g, axis=1)
    l_b = jnp.sum(e * ss_b, axis=1)
    return jnp.stack((l_r, l_g, l_b), axis=1)


def white_balance_ref(raw, light):
    return raw / light.reshape(light.shape + (1, 1))


if __name__ == "__main__":
    key = jax.random.PRNGKey(0)
    ke, ks, kr = jax.random.split(key, 3)

    B, C, H, W = 2, 3, 16, 16   # rawAppearence (NCHW), 3 camera channels
    S = 33                      # spectral bands (bioFace wavelength count)

    # Positive spectra / camera sensitivities keep the light colour bounded
    # away from zero (physical regime; avoids division blow-up in the check).
    e = jax.random.uniform(ke, (B, S), jnp.float32, minval=0.1, maxval=1.0)
    cam_ss = jax.random.uniform(ks, (3, S), jnp.float32, minval=0.1, maxval=1.0)
    raw = jax.random.uniform(kr, (B, C, H, W), jnp.float32,
                             minval=0.0, maxval=1.0)

    # Dependent module: LightColour, then the whiteBalance kernel under test.
    light = light_colour(e, (cam_ss[0], cam_ss[1], cam_ss[2]))
    out = white_balance(raw, light)
    out = jax.block_until_ready(out)
    assert out.shape == (B, C, H, W), out.shape

    # Validate against the pure-JAX reference of both modules.
    light_ref = light_colour_ref(e, (cam_ss[0], cam_ss[1], cam_ss[2]))
    ref = jax.block_until_ready(white_balance_ref(raw, light_ref))

    light_err = float(jnp.max(jnp.abs(light - light_ref)))
    assert light_err < 1e-4, f"LightColour mismatch vs reference: {light_err}"
    max_err = float(jnp.max(jnp.abs(out - ref)))
    assert max_err < 1e-4, f"whiteBalance mismatch vs reference: {max_err}"

    print("KERNEL_OK")
</pallas_src>

<mosaic_0001>
module attributes {stable_mosaic.version = 11 : i64} {
  func.func @_light_colour_kernel(%arg0: i32, %arg1: memref<2x33xf32, #tpu.memory_space<vmem>>, %arg2: memref<33x3xf32, #tpu.memory_space<vmem>>, %arg3: memref<2x3xf32, #tpu.memory_space<vmem>>) attributes {dimension_semantics = [#tpu.dimension_semantics<parallel>], iteration_bounds = array<i64: 1>, scalar_prefetch = 0 : i64, scratch_operands = 0 : i64, tpu.core_type = #tpu.core_type<tc>, window_params = [{pipeline_mode = #tpu.pipeline_mode<synchronous>, transform_indices = @transform_0, window_bounds = array<i64: 2, 33>}, {pipeline_mode = #tpu.pipeline_mode<synchronous>, transform_indices = @transform_1, window_bounds = array<i64: 33, 3>}, {pipeline_mode = #tpu.pipeline_mode<synchronous>, transform_indices = @transform_2, window_bounds = array<i64: 2, 3>}]} {
    %c0 = arith.constant 0 : index
    %c0_0 = arith.constant 0 : index
    %0 = vector.load %arg1[%c0, %c0_0] : memref<2x33xf32, #tpu.memory_space<vmem>>, vector<2x33xf32>
    %c0_1 = arith.constant 0 : index
    %c0_2 = arith.constant 0 : index
    %1 = vector.load %arg2[%c0_1, %c0_2] : memref<33x3xf32, #tpu.memory_space<vmem>>, vector<33x3xf32>
    %cst = arith.constant dense<0.000000e+00> : vector<2x3xf32>
    %2 = tpu.matmul %0, %1, %cst {dimension_numbers = #tpu.dot_dimension_numbers<[1], [0], [0], [1], [0, 0, 1, 1], [], []>} : vector<2x33xf32>, vector<33x3xf32>, vector<2x3xf32> -> vector<2x3xf32>
    %c0_3 = arith.constant 0 : index
    %c0_4 = arith.constant 0 : index
    %3 = vector.load %arg3[%c0_3, %c0_4] : memref<2x3xf32, #tpu.memory_space<vmem>>, vector<2x3xf32>
    tpu.vector_store %arg3[%c0_3, %c0_4], %2 {strides = array<i32>} : memref<2x3xf32, #tpu.memory_space<vmem>>, vector<2x3xf32>,
    return
  }
  func.func @transform_0(%arg0: i32) -> (i32, i32) {
    %c0_i32 = arith.constant 0 : i32
    %c0_i32_0 = arith.constant 0 : i32
    %c0_i32_1 = arith.constant 0 : i32
    return %c0_i32, %c0_i32_0 : i32, i32
  }
  func.func @transform_1(%arg0: i32) -> (i32, i32) {
    %c0_i32 = arith.constant 0 : i32
    %c0_i32_0 = arith.constant 0 : i32
    %c0_i32_1 = arith.constant 0 : i32
    return %c0_i32, %c0_i32_0 : i32, i32
  }
  func.func @transform_2(%arg0: i32) -> (i32, i32) {
    %c0_i32 = arith.constant 0 : i32
    %c0_i32_0 = arith.constant 0 : i32
    %c0_i32_1 = arith.constant 0 : i32
    return %c0_i32, %c0_i32_0 : i32, i32
  }
}

</mosaic_0001>

<llo_original>
// kernel: tpu_custom_call.1
$region0: #{tpu_custom_call.1}
  #allocation0 [shape = 'u32[]', space=smem, size = 0x4, offset = 0x4, fixed_abs, tag = 'smem constant byte address 0x4 - core index']
  #allocation1 [shape = 'u32[72,128]{1,0:T(1,128)}', space=vmem, size = 0x9000, scoped, tag = 'internal scratch']
  %s0 = inlined_call_operand.vmem [shape: f32[2,33], index: 0, kind: input, shape index: {}]
  %s1 = inlined_call_operand.vmem [shape: f32[33,3], index: 1, kind: input, shape index: {}]
  %s2 = inlined_call_operand.hbm [shape: f32[2,3], index: 2, kind: output, shape index: {}]
  %s3 = sld [smem:[#allocation0]]
  $region18: #{tpu_custom_call.1} parent=0
    _
  %s5 = ssub.s32 1, %s3
  %s6 = scalar_select 0, %s5, %s3
  $region1: #{tpu_custom_call.1} parent=0
    #allocation2 [shape = 'u8[1024]{0}', space=vmem, size = 0x400, scoped, tag = 'output window, operand 0, single buffered']
    #allocation3 [shape = 's32[1]{0}', space=sflag, size = 0x4, scoped, tag = 'scoped memory for tpu_custom_call.1']
    %7 = vsyncpa [#allocation3], 0
    // Predicated region
    $region2: #{tpu_custom_call.1} parent=1 // pred_check
      _
    $region3: #{tpu_custom_call.1} parent=1 // pred_check_branch
      %9 = sbr.rel (0) target = $region5
    $region4: #{tpu_custom_call.1} parent=1 // pred_region
      _
    $region5: #{tpu_custom_call.1} parent=1 // pred_fallthru
      _
    // Predicated region
    $region6: #{tpu_custom_call.1} parent=1 // pred_check
      _
    $region7: #{tpu_custom_call.1} parent=1 // pred_check_branch
      %11 = sbr.rel (0) target = $region9
    $region8: #{tpu_custom_call.1} parent=1 // pred_region
      _
    $region9: #{tpu_custom_call.1} parent=1 // pred_fallthru
      _
    %v12 = vld [vmem:[%s0] sm:$0x3]
    %v13 = vld [vmem:[%s1] sm:$0xff]
    %v14 = vld [vmem:[%s1 + $0x8] sm:$0xff]
    %v15 = vld [vmem:[%s1 + $0x10] sm:$0xff]
    %v16 = vld [vmem:[%s1 + $0x18] sm:$0xff]
    %v17 = vld [vmem:[%s1 + $0x20] sm:$0x1]
    %vm18 = vcmask 269312
    %v20 = vsel %vm18, %v12, 0
    %vm22 = vcmask 1040384
    %v24 = vsel %vm22, %v17, 0
    %26 = vmatpush.msra.mxu0 0.0
    %27 = vmatpush.msra.mxu0 0.0
    %28 = vmatpush.msra.mxu0 0.0
    %29 = vmatpush.msra.mxu0 0.0
    %30 = vmatpush.msra.mxu0 0.0
    %31 = vmatpush.msra.mxu0 0.0
    %32 = vmatpush.msra.mxu0 0.0
    %33 = vmatpush.msra.mxu0 0.0
    %34 = vmatpush.msra.mxu0 0.0
    %35 = vmatpush.msra.mxu0 0.0
    %36 = vmatpush.msra.mxu0 0.0
    %37 = vmatpush.msra.mxu0 %v24
    %38 = vmatpush.msra.mxu0 %v16
    %39 = vmatpush.msra.mxu0 %v15
    %40 = vmatpush.msra.mxu0 %v14
    %41 = vmatpush.msra.mxu0 %v13
    %42 = vmatmul.f32.gmra.mxu0 %v20
    %v43 = vpop.f32.mrf.mxu0
    %v44 = vadd.f32 0.0, %v43
    %45 = vdwg.mxu0
    %vm46 = vcmask 17408
    %47 = vst.msk [vmem:[#allocation2] sm:$0x3] %vm46, %v44
    // Predicated region
    $region10: #{tpu_custom_call.1} parent=1 // pred_check
      _
    $region11: #{tpu_custom_call.1} parent=1 // pred_check_branch
      %49 = sbr.rel (0) target = $region13
    $region12: #{tpu_custom_call.1} parent=1 // pred_region
      %51 = vsyncadd [#allocation3], 0
      %s53 = sshll.u32 [#allocation2], 4
      %s54 = int_to_ptr.vmem [resolvable:$true] %s53
      %s55 = sshll.u32 %s2, 4
      %s56 = int_to_ptr.hbm [resolvable:$true] %s55
      %58 = dma.vmem_to_hbm [thread:$0]  %s54, 32, %s56, [#allocation3]
    $region13: #{tpu_custom_call.1} parent=1 // pred_fallthru
      _
    // Predicated region
    $region14: #{tpu_custom_call.1} parent=1 // pred_check
      _
    $region15: #{tpu_custom_call.1} parent=1 // pred_check_branch
      %60 = sbr.rel (0) target = $region17
    $region16: #{tpu_custom_call.1} parent=1 // pred_region
      %62 = dma.done [#allocation3], 32
    $region17: #{tpu_custom_call.1} parent=1 // pred_fallthru
      _
    %63 = vsyncpa [#allocation3], 1

</llo_original>
